<compile_context>
chip_gen: v7x
topology: tpu7x:2x2x1
jax: 0.10.0
libtpu: 0.0.40
codegen_flags: <defaults>
</compile_context>

<pallas_src>
import jax
import jax.numpy as jnp
from jax.experimental import pallas as pl
from jax.experimental.pallas import tpu as pltpu


def critic_kernel(x_ref, w_ref, b_ref, wo_ref, bo_ref, out_ref):
    # x_ref : (K, TB)   fused activations [s||a]^T, batch on the lane axis
    # w_ref : (N, K)    fused first-layer weight [Ws | Wa] (PyTorch layout)
    # b_ref : (N, 1)    fused first-layer bias column (bs + ba)
    # wo_ref: (N, 1)    output-layer weight column
    # bo_ref: (1,)      output-layer bias, SMEM scalar
    # out_ref: (1, 1, TB) lane-dense Q-value row for this batch tile
    z = jnp.dot(w_ref[...], x_ref[...], preferred_element_type=jnp.float32)  # (N, TB)
    h = jnp.maximum(z + b_ref[...], 0.0)                                     # ReLU
    q = jnp.sum(h * wo_ref[...], axis=0, keepdims=True)                      # (1, TB)
    out_ref[...] = (q + bo_ref[0]).reshape(out_ref.shape)


def simple_critic_net(s, a, params, *, tb=None):
    """Forward pass of SimpleCriticNet using fused params from prepare_params()."""
    w_cat, b_fused, wo_col, bo = params
    B = s.shape[0]
    K = s.shape[1] + a.shape[1]
    N = w_cat.shape[0]
    if tb is None:
        # lane-dense batch tile: multiple of 128, capped at 512 rows per step
        tb = min(512, ((max(B, 1) + 127) // 128) * 128)
    g = pl.cdiv(B, tb)
    b_pad = g * tb

    # [s || a], zero-padded to a whole number of tiles, batch moved to lanes.
    x = jnp.concatenate([s, a], axis=1).astype(jnp.float32)
    x = jnp.pad(x, ((0, b_pad - B), (0, 0)))
    x_t = x.T                                                   # (K, b_pad)

    out = pl.pallas_call(
        critic_kernel,
        out_shape=jax.ShapeDtypeStruct((g, 1, tb), jnp.float32),
        grid=(g,),
        in_specs=[
            pl.BlockSpec((K, tb), lambda i: (0, i)),            # batch tile
            pl.BlockSpec((N, K), lambda i: (0, 0)),             # fused W, resident
            pl.BlockSpec((N, 1), lambda i: (0, 0)),             # fused bias
            pl.BlockSpec((N, 1), lambda i: (0, 0)),             # output weight
            pl.BlockSpec(memory_space=pltpu.MemorySpace.SMEM),  # output bias scalar
        ],
        out_specs=pl.BlockSpec((1, 1, tb), lambda i: (i, 0, 0)),
        compiler_params=pltpu.CompilerParams(
            dimension_semantics=("parallel",)),
    )(x_t, w_cat, b_fused, wo_col, bo)

    # un-pad and restore PyTorch (B, 1) output layout
    return out.reshape(-1)[:B].reshape(B, 1)


def init_params(key, n_states, n_actions, n_neurons):
    """Deterministic init mirroring the PyTorch module (PyTorch weight layout):
    weights ~ N(0, 0.1); biases ~ U(-1/sqrt(fan_in), 1/sqrt(fan_in))."""
    ks = jax.random.split(key, 6)
    ws = 0.1 * jax.random.normal(ks[0], (n_neurons, n_states), jnp.float32)
    wa = 0.1 * jax.random.normal(ks[1], (n_neurons, n_actions), jnp.float32)
    wo = 0.1 * jax.random.normal(ks[2], (1, n_neurons), jnp.float32)
    bnd_s = 1.0 / jnp.sqrt(jnp.float32(n_states))
    bnd_a = 1.0 / jnp.sqrt(jnp.float32(n_actions))
    bnd_o = 1.0 / jnp.sqrt(jnp.float32(n_neurons))
    bs = jax.random.uniform(ks[3], (n_neurons,), jnp.float32, -bnd_s, bnd_s)
    ba = jax.random.uniform(ks[4], (n_neurons,), jnp.float32, -bnd_a, bnd_a)
    bo = jax.random.uniform(ks[5], (1,), jnp.float32, -bnd_o, bnd_o)
    return ws, bs, wa, ba, wo, bo


def prepare_params(raw_params):
    """Fuse the two first-layer branches and lay params out for the kernel."""
    ws, bs, wa, ba, wo, bo = raw_params
    w_cat = jnp.concatenate([ws, wa], axis=1)       # (N, n_states + n_actions)
    b_fused = (bs + ba).reshape(-1, 1)              # (N, 1)
    wo_col = wo.reshape(-1, 1)                      # (N, 1)
    bo = bo.reshape(1).astype(jnp.float32)          # (1,)  -> SMEM scalar
    return w_cat, b_fused, wo_col, bo


def reference_forward(s, a, raw_params):
    """Pure-JAX reference in the original two-branch PyTorch form."""
    ws, bs, wa, ba, wo, bo = raw_params
    x_s = s @ ws.T + bs
    x_a = a @ wa.T + ba
    x = jnp.maximum(x_s + x_a, 0.0)
    return x @ wo.T + bo


if __name__ == "__main__":
    B, n_states, n_actions, n_neurons = 8, 16, 4, 30

    key = jax.random.PRNGKey(0)
    k_s, k_a, k_p = jax.random.split(key, 3)
    s = jax.random.normal(k_s, (B, n_states), jnp.float32)
    a = jax.random.normal(k_a, (B, n_actions), jnp.float32)

    raw_params = init_params(k_p, n_states, n_actions, n_neurons)
    params = prepare_params(raw_params)

    q = jax.jit(simple_critic_net)(s, a, params)
    q = jax.block_until_ready(q)

    q_ref = reference_forward(s, a, raw_params)
    assert q.shape == (B, 1)
    assert jnp.allclose(q, q_ref, atol=1e-5, rtol=1e-5)

    print("KERNEL_OK")
</pallas_src>

<mosaic_0001>
module attributes {stable_mosaic.version = 11 : i64} {
  func.func @critic_kernel(%arg0: i32, %arg1: memref<20x128xf32, #tpu.memory_space<vmem>>, %arg2: memref<30x20xf32, #tpu.memory_space<vmem>>, %arg3: memref<30x1xf32, #tpu.memory_space<vmem>>, %arg4: memref<30x1xf32, #tpu.memory_space<vmem>>, %arg5: memref<1xf32, #tpu.memory_space<smem>>, %arg6: memref<1x1x128xf32, #tpu.memory_space<vmem>>) attributes {dimension_semantics = [#tpu.dimension_semantics<parallel>], iteration_bounds = array<i64: 1>, scalar_prefetch = 0 : i64, scratch_operands = 0 : i64, tpu.core_type = #tpu.core_type<tc>, window_params = [{transform_indices = @transform_0, window_bounds = array<i64: 20, 128>}, {pipeline_mode = #tpu.pipeline_mode<synchronous>, transform_indices = @transform_1, window_bounds = array<i64: 30, 20>}, {pipeline_mode = #tpu.pipeline_mode<synchronous>, transform_indices = @transform_2, window_bounds = array<i64: 30, 1>}, {pipeline_mode = #tpu.pipeline_mode<synchronous>, transform_indices = @transform_3, window_bounds = array<i64: 30, 1>}, {transform_indices = @transform_4, window_bounds = array<i64: 1>}, {transform_indices = @transform_5, window_bounds = array<i64: 1, 1, 128>}]} {
    %c0 = arith.constant 0 : index
    %c0_0 = arith.constant 0 : index
    %0 = vector.load %arg2[%c0, %c0_0] : memref<30x20xf32, #tpu.memory_space<vmem>>, vector<30x20xf32>
    %c0_1 = arith.constant 0 : index
    %c0_2 = arith.constant 0 : index
    %1 = vector.load %arg1[%c0_1, %c0_2] : memref<20x128xf32, #tpu.memory_space<vmem>>, vector<20x128xf32>
    %cst = arith.constant dense<0.000000e+00> : vector<30x128xf32>
    %2 = tpu.matmul %0, %1, %cst {dimension_numbers = #tpu.dot_dimension_numbers<[1], [0], [0], [1], [0, 0, 1, 1], [], []>} : vector<30x20xf32>, vector<20x128xf32>, vector<30x128xf32> -> vector<30x128xf32>
    %c0_3 = arith.constant 0 : index
    %c0_4 = arith.constant 0 : index
    %3 = vector.load %arg3[%c0_3, %c0_4] : memref<30x1xf32, #tpu.memory_space<vmem>>, vector<30x1xf32>
    %4 = vector.broadcast %3 : vector<30x1xf32> to vector<30x128xf32>
    %5 = arith.addf %2, %4 : vector<30x128xf32>
    %cst_5 = arith.constant 0.000000e+00 : f32
    %6 = vector.broadcast %cst_5 : f32 to vector<30x128xf32>
    %7 = arith.maximumf %5, %6 : vector<30x128xf32>
    %c0_6 = arith.constant 0 : index
    %c0_7 = arith.constant 0 : index
    %8 = vector.load %arg4[%c0_6, %c0_7] : memref<30x1xf32, #tpu.memory_space<vmem>>, vector<30x1xf32>
    %9 = vector.broadcast %8 : vector<30x1xf32> to vector<30x128xf32>
    %10 = arith.mulf %7, %9 : vector<30x128xf32>
    %cst_8 = arith.constant dense<0.000000e+00> : vector<128xf32>
    %11 = vector.multi_reduction <add>, %10, %cst_8 [0] : vector<30x128xf32> to vector<128xf32>
    %12 = vector.shape_cast %11 : vector<128xf32> to vector<1x128xf32>
    %c0_9 = arith.constant 0 : index
    %13 = memref.load %arg5[%c0_9] : memref<1xf32, #tpu.memory_space<smem>>
    %14 = vector.broadcast %13 : f32 to vector<1x128xf32>
    %15 = arith.addf %12, %14 : vector<1x128xf32>
    %16 = vector.shape_cast %15 : vector<1x128xf32> to vector<1x1x128xf32>
    %c0_10 = arith.constant 0 : index
    %c0_11 = arith.constant 0 : index
    %c0_12 = arith.constant 0 : index
    %17 = vector.load %arg6[%c0_10, %c0_11, %c0_12] : memref<1x1x128xf32, #tpu.memory_space<vmem>>, vector<1x1x128xf32>
    tpu.vector_store %arg6[%c0_10, %c0_11, %c0_12], %16 {strides = array<i32>} : memref<1x1x128xf32, #tpu.memory_space<vmem>>, vector<1x1x128xf32>,
    return
  }
  func.func @transform_0(%arg0: i32) -> (i32, i32) {
    %c0_i32 = arith.constant 0 : i32
    %c0_i32_0 = arith.constant 0 : i32
    return %c0_i32, %arg0 : i32, i32
  }
  func.func @transform_1(%arg0: i32) -> (i32, i32) {
    %c0_i32 = arith.constant 0 : i32
    %c0_i32_0 = arith.constant 0 : i32
    %c0_i32_1 = arith.constant 0 : i32
    return %c0_i32, %c0_i32_0 : i32, i32
  }
  func.func @transform_2(%arg0: i32) -> (i32, i32) {
    %c0_i32 = arith.constant 0 : i32
    %c0_i32_0 = arith.constant 0 : i32
    %c0_i32_1 = arith.constant 0 : i32
    return %c0_i32, %c0_i32_0 : i32, i32
  }
  func.func @transform_3(%arg0: i32) -> (i32, i32) {
    %c0_i32 = arith.constant 0 : i32
    %c0_i32_0 = arith.constant 0 : i32
    %c0_i32_1 = arith.constant 0 : i32
    return %c0_i32, %c0_i32_0 : i32, i32
  }
  func.func @transform_4(%arg0: i32) -> i32 {
    %c0_i32 = arith.constant 0 : i32
    %c0_i32_0 = arith.constant 0 : i32
    return %c0_i32 : i32
  }
  func.func @transform_5(%arg0: i32) -> (i32, i32, i32) {
    %c0_i32 = arith.constant 0 : i32
    %c0_i32_0 = arith.constant 0 : i32
    %c0_i32_1 = arith.constant 0 : i32
    return %arg0, %c0_i32, %c0_i32_0 : i32, i32, i32
  }
}

</mosaic_0001>

<llo_original>
// kernel: simple_critic_net.1
$region0: #{simple_critic_net.1}
  #allocation0 [shape = 'u32[]', space=smem, size = 0x4, offset = 0x4, fixed_abs, tag = 'smem constant byte address 0x4 - core index']
  #allocation1 [shape = 'u32[144,128]{1,0:T(1,128)}', space=vmem, size = 0x12000, scoped, tag = 'internal scratch']
  #allocation2 [shape = 'f32[1]{0:T(128)S(6)}', space=smem, size = 0x200, scoped, tag = 'scoped memory for simple_critic_net.1']
  %s0 = inlined_call_operand.vmem [shape: f32[20,128], index: 0, kind: input, shape index: {}]
  %s1 = inlined_call_operand.vmem [shape: f32[30,20], index: 1, kind: input, shape index: {}]
  %s2 = inlined_call_operand.vmem [shape: f32[30,1], index: 2, kind: input, shape index: {}]
  %s3 = inlined_call_operand.vmem [shape: f32[30,1], index: 3, kind: input, shape index: {}]
  %s4 = inlined_call_operand.<no memory space> [shape: f32[1], index: 4, kind: input, shape index: {}]
  %s5 = inlined_call_operand.vmem [shape: f32[1,1,128], index: 5, kind: output, shape index: {}]
  %s6 = sld [smem:[#allocation0]]
  $region30: #{simple_critic_net.1} parent=0
    _
  %s8 = ssub.s32 1, %s6
  %s9 = scalar_select 0, %s8, %s6
  %10 = sst [smem:[#allocation2]] %s4
  // Predicated region
  $region2: #{simple_critic_net.1} parent=0 // pred_check
    _
  $region3: #{simple_critic_net.1} parent=0 // pred_check_branch
    %12 = sbr.rel (0) target = $region5
  $region4: #{simple_critic_net.1} parent=0 // pred_region
    _
  $region5: #{simple_critic_net.1} parent=0 // pred_fallthru
    _
  // Predicated region
  $region6: #{simple_critic_net.1} parent=0 // pred_check
    _
  $region7: #{simple_critic_net.1} parent=0 // pred_check_branch
    %14 = sbr.rel (0) target = $region9
  $region8: #{simple_critic_net.1} parent=0 // pred_region
    _
  $region9: #{simple_critic_net.1} parent=0 // pred_fallthru
    _
  // Predicated region
  $region10: #{simple_critic_net.1} parent=0 // pred_check
    _
  $region11: #{simple_critic_net.1} parent=0 // pred_check_branch
    %16 = sbr.rel (0) target = $region13
  $region12: #{simple_critic_net.1} parent=0 // pred_region
    _
  $region13: #{simple_critic_net.1} parent=0 // pred_fallthru
    _
  // Predicated region
  $region14: #{simple_critic_net.1} parent=0 // pred_check
    _
  $region15: #{simple_critic_net.1} parent=0 // pred_check_branch
    %18 = sbr.rel (0) target = $region17
  $region16: #{simple_critic_net.1} parent=0 // pred_region
    _
  $region17: #{simple_critic_net.1} parent=0 // pred_fallthru
    _
  // Predicated region
  $region18: #{simple_critic_net.1} parent=0 // pred_check
    _
  $region19: #{simple_critic_net.1} parent=0 // pred_check_branch
    %20 = sbr.rel (0) target = $region21
  $region20: #{simple_critic_net.1} parent=0 // pred_region
    _
  $region21: #{simple_critic_net.1} parent=0 // pred_fallthru
    _
  %v21 = vld [vmem:[%s1] sm:$0xff]
  %v22 = vld [vmem:[%s1 + $0x8] sm:$0xff]
  %v23 = vld [vmem:[%s1 + $0x10] sm:$0xff]
  %v24 = vld [vmem:[%s1 + $0x18] sm:$0x3f]
  %v25 = vld [vmem:[%s0] sm:$0xff]
  %v26 = vld [vmem:[%s0 + $0x8] sm:$0xff]
  %v27 = vld [vmem:[%s0 + $0x10] sm:$0xf]
  %v28 = vld [vmem:[%s2] sm:$0xff]
  %v29 = vld [vmem:[%s2 + $0x8] sm:$0xff]
  %v30 = vld [vmem:[%s2 + $0x10] sm:$0xff]
  %v31 = vld [vmem:[%s2 + $0x18] sm:$0x3f]
  %33 = vset.pattern.permute.xlu0 0
  %34 = vperm.xlu0 %33, %v28
  %v35 = vpop.permute.xlu0 %34
  %38 = vset.pattern.permute.xlu0 0
  %39 = vperm.xlu0 %38, %v29
  %v40 = vpop.permute.xlu0 %39
  %43 = vset.pattern.permute.xlu0 0
  %44 = vperm.xlu0 %43, %v30
  %v45 = vpop.permute.xlu0 %44
  %48 = vset.pattern.permute.xlu0 0
  %49 = vperm.xlu0 %48, %v31
  %v50 = vpop.permute.xlu0 %49
  %vm52 = vcmask 162816
  %v54 = vsel %vm52, %v21, 0
  %v57 = vsel %vm52, %v22, 0
  %v60 = vsel %vm52, %v23, 0
  %v63 = vsel %vm52, %v24, 0
  %vm65 = vcmask 1043456
  %v67 = vsel %vm65, %v27, 0
  %69 = vmatprep.subr.mxu0 0.0
  %70 = vmatpush1.msra.mxu0 %v25
  %71 = vmatprep.subr.mxu0 0.0
  %72 = vmatpush1.msra.mxu0 %v26
  %73 = vmatprep.subr.mxu0 0.0
  %74 = vmatpush1.msra.mxu0 %v67
  %75 = vmatprep.subr.mxu0 0.0
  %76 = vmatpush1.msra.mxu0 0.0
  %77 = vmatprep.subr.mxu0 0.0
  %78 = vmatpush1.msra.mxu0 0.0
  %79 = vmatprep.subr.mxu0 0.0
  %80 = vmatpush1.msra.mxu0 0.0
  %81 = vmatprep.subr.mxu0 0.0
  %82 = vmatpush1.msra.mxu0 0.0
  %83 = vmatprep.subr.mxu0 0.0
  %84 = vmatpush1.msra.mxu0 0.0
  %85 = vmatprep.subr.mxu0 0.0
  %86 = vmatpush1.msra.mxu0 0.0
  %87 = vmatprep.subr.mxu0 0.0
  %88 = vmatpush1.msra.mxu0 0.0
  %89 = vmatprep.subr.mxu0 0.0
  %90 = vmatpush1.msra.mxu0 0.0
  %91 = vmatprep.subr.mxu0 0.0
  %92 = vmatpush1.msra.mxu0 0.0
  %93 = vmatprep.subr.mxu0 0.0
  %94 = vmatpush1.msra.mxu0 0.0
  %95 = vmatprep.subr.mxu0 0.0
  %96 = vmatpush1.msra.mxu0 0.0
  %97 = vmatprep.subr.mxu0 0.0
  %98 = vmatpush1.msra.mxu0 0.0
  %99 = vmatprep.subr.mxu0 0.0
  %100 = vmatpush1.msra.mxu0 0.0
  %101 = vmatprep.subr.mxu0 0.0
  %102 = vmatpush1.msra.mxu0 0.0
  %103 = vmatprep.subr.mxu0 0.0
  %104 = vmatpush1.msra.mxu0 0.0
  %105 = vmatprep.subr.mxu0 0.0
  %106 = vmatpush1.msra.mxu0 0.0
  %107 = vmatprep.subr.mxu0 0.0
  %108 = vmatpush1.msra.mxu0 0.0
  %109 = vmatprep.subr.mxu0 0.0
  %110 = vmatpush1.msra.mxu0 0.0
  %111 = vmatprep.subr.mxu0 0.0
  %112 = vmatpush1.msra.mxu0 0.0
  %113 = vmatprep.subr.mxu0 0.0
  %114 = vmatpush1.msra.mxu0 0.0
  %115 = vmatprep.subr.mxu0 0.0
  %116 = vmatpush1.msra.mxu0 0.0
  %117 = vmatprep.subr.mxu0 0.0
  %118 = vmatpush1.msra.mxu0 0.0
  %119 = vmatprep.subr.mxu0 0.0
  %120 = vmatpush1.msra.mxu0 0.0
  %121 = vmatprep.subr.mxu0 0.0
  %122 = vmatpush1.msra.mxu0 0.0
  %123 = vmatprep.subr.mxu0 0.0
  %124 = vmatpush1.msra.mxu0 0.0
  %125 = vmatprep.subr.mxu0 0.0
  %126 = vmatpush1.msra.mxu0 0.0
  %127 = vmatprep.subr.mxu0 0.0
  %128 = vmatpush1.msra.mxu0 0.0
  %129 = vmatprep.subr.mxu0 0.0
  %130 = vmatpush1.msra.mxu0 0.0
  %131 = vmatprep.subr.mxu0 0.0
  %132 = vmatpush1.msra.mxu0 0.0
  %133 = vmatprep.mubr.f32.mxu0 0.0
  %134 = vmatmul.mubr.f32.gmra.mrb[0].mxu0 %v54
  %v135 = vpop.f32.mrb[0].mxu0
  %v136 = vadd.f32 %v35, %v135
  %v137 = vpop.f32.mrb[0].mxu0
  %138 = vmatprep.mubr.f32.mxu0 0.0
  %139 = vmatmul.mubr.f32.gmra.mrb[0].mxu0 %v57
  %v140 = vpop.f32.mrb[0].mxu0
  %v141 = vadd.f32 %v40, %v140
  %v142 = vpop.f32.mrb[0].mxu0
  %143 = vmatprep.mubr.f32.mxu0 0.0
  %144 = vmatmul.mubr.f32.gmra.mrb[0].mxu0 %v60
  %v145 = vpop.f32.mrb[0].mxu0
  %v146 = vadd.f32 %v45, %v145
  %v147 = vpop.f32.mrb[0].mxu0
  %148 = vmatprep.mubr.f32.mxu0 0.0
  %149 = vmatmul.mubr.f32.gmra.mrb[0].mxu0 %v63
  %v150 = vpop.f32.mrb[0].mxu0
  %v151 = vadd.f32 %v50, %v150
  %v152 = vpop.f32.mrb[0].mxu0
  %153 = vdwg.mxu0
  %v154 = vmax.f32 %v136, 0.0
  %v155 = vmax.f32 %v141, 0.0
  %v156 = vmax.f32 %v146, 0.0
  %v157 = vmax.f32 %v151, 0.0
  %v158 = vld [vmem:[%s3] sm:$0xff]
  %v159 = vld [vmem:[%s3 + $0x8] sm:$0xff]
  %v160 = vld [vmem:[%s3 + $0x10] sm:$0xff]
  %v161 = vld [vmem:[%s3 + $0x18] sm:$0x3f]
  %163 = vset.pattern.permute.xlu0 0
  %164 = vperm.xlu0 %163, %v158
  %v165 = vpop.permute.xlu0 %164
  %168 = vset.pattern.permute.xlu0 0
  %169 = vperm.xlu0 %168, %v159
  %v170 = vpop.permute.xlu0 %169
  %173 = vset.pattern.permute.xlu0 0
  %174 = vperm.xlu0 %173, %v160
  %v175 = vpop.permute.xlu0 %174
  %178 = vset.pattern.permute.xlu0 0
  %179 = vperm.xlu0 %178, %v161
  %v180 = vpop.permute.xlu0 %179
  %v182 = vmul.f32 %v154, %v165
  %v183 = vmul.f32 %v155, %v170
  %v184 = vmul.f32 %v156, %v175
  %v185 = vmul.f32 %v157, %v180
  %v186 = vadd.f32 %v182, %v183
  %v187 = vadd.f32 %v186, %v184
  %vm188 = vcmask 1045504
  %v189 = vsel %vm188, %v185, 0.0
  %v190 = vadd.f32 %v187, %v189
  %v191 = vrot.slane %v190, 4
  %v192 = vadd.f32 %v190, %v191
  %v193 = vrot.slane %v192, 2
  %v194 = vadd.f32 %v192, %v193
  %v195 = vrot.slane %v194, 1
  %v196 = vadd.f32 %v194, %v195
  %s197 = sld [smem:[#allocation2]]
  %v198 = vstv %s197
  %v199 = vadd.f32 %v196, %v198
  %200 = vst [vmem:[%s5] sm:$0x1] %v199
  // Predicated region
  $region22: #{simple_critic_net.1} parent=0 // pred_check
    _
  $region23: #{simple_critic_net.1} parent=0 // pred_check_branch
    %202 = sbr.rel (0) target = $region25
  $region24: #{simple_critic_net.1} parent=0 // pred_region
    _
  $region25: #{simple_critic_net.1} parent=0 // pred_fallthru
    _
  // Predicated region
  $region26: #{simple_critic_net.1} parent=0 // pred_check
    _
  $region27: #{simple_critic_net.1} parent=0 // pred_check_branch
    %204 = sbr.rel (0) target = $region29
  $region28: #{simple_critic_net.1} parent=0 // pred_region
    _
  $region29: #{simple_critic_net.1} parent=0 // pred_fallthru
    _

</llo_original>
